<compile_context>
chip_gen: v7x
topology: tpu7x:2x2x1
jax: 0.10.0
libtpu: 0.0.40
codegen_flags: <defaults>
</compile_context>

<pallas_src>
import numpy as np
import jax
import jax.numpy as jnp
from jax.experimental import pallas as pl
from jax.experimental.pallas import tpu as pltpu

FILTER = 5       # args.filter  (kx == ky == 5)
SIGMA = 0.001    # transforms.GaussianBlur(sigma=(0.001, 0.001)) -> fixed sigma


def _gaussian_kernel1d(kernel_size: int, sigma: float) -> np.ndarray:
    # Matches torchvision._get_gaussian_kernel1d exactly.
    ksize_half = (kernel_size - 1) * 0.5
    x = np.linspace(-ksize_half, ksize_half, num=kernel_size, dtype=np.float32)
    pdf = np.exp(-0.5 * (x / np.float32(sigma)) ** 2)
    return (pdf / pdf.sum()).astype(np.float32)


def _reflect_conv_matrix(n: int, k1d: np.ndarray) -> np.ndarray:
    """(n, n) matrix B such that B @ v equals the 1D cross-correlation of v with
    k1d under 'reflect' padding (same as torchvision / np.pad(mode='reflect'))."""
    K = k1d.shape[0]
    pad = K // 2
    assert n > pad, "reflect padding requires spatial dim > kernel_size // 2"
    B = np.zeros((n, n), dtype=np.float64)
    for i in range(n):
        for t in range(K):
            j = i - pad + t
            if j < 0:
                j = -j                      # reflect (no edge repeat)
            elif j >= n:
                j = 2 * (n - 1) - j
            B[i, j] += float(k1d[t])
    return B.astype(np.float32)


def _blur_kernel(x_ref, by_ref, bxt_ref, o_ref):
    """One grid step: out[c] = By @ x[c] @ BxT for a block of Bc channels (MXU)."""
    x = x_ref[...].astype(jnp.float32)                     # (Bc, H, W)
    bc = x.shape[0]
    byv = by_ref[...]                                      # (H, H)
    bxtv = bxt_ref[...]                                    # (W, W)
    by_b = jnp.broadcast_to(byv, (bc,) + byv.shape)        # (Bc, H, H)
    bxt_b = jnp.broadcast_to(bxtv, (bc,) + bxtv.shape)     # (Bc, W, W)
    # Column blur (contract W) — batched MXU matmul.
    y = jnp.einsum("chw,cwv->chv", x, bxt_b, preferred_element_type=jnp.float32)
    # Row blur (contract H) — batched MXU matmul.
    z = jnp.einsum("chr,crw->chw", by_b, y, preferred_element_type=jnp.float32)
    o_ref[...] = z.astype(o_ref.dtype)


def _pick_block_channels(nc: int, h: int, w: int, itemsize: int,
                         vmem_budget_bytes: int = 4 * 1024 * 1024) -> int:
    """Channels per grid step sized against a conservative VMEM budget that fits
    the default scoped VMEM on v5e/v6e/v7x."""
    per_ch = (
        4 * h * w * itemsize        # in + out tile, double-buffered by the pipeline
        + 12 * h * w                # f32 intermediates inside the kernel (x, y, z)
        + 4 * (h * h + w * w)       # per-channel broadcast of the two blur matrices
    )
    bc = max(1, vmem_budget_bytes // per_ch)
    return int(min(nc, bc))


def gaussian_blur(x: jax.Array, kernel_size: int = FILTER, sigma: float = SIGMA) -> jax.Array:
    """GaussianBlur forward.  x: (N, C, H, W) float32 -> (N, C, H, W) float32."""
    N, C, H, W = x.shape
    K = kernel_size
    pad = K // 2
    assert H > pad and W > pad, "reflect padding requires H, W > kernel_size // 2"

    k1d = _gaussian_kernel1d(K, sigma)
    by = jnp.asarray(_reflect_conv_matrix(H, k1d))        # (H, H): left-multiply  (row blur)
    bxt = jnp.asarray(_reflect_conv_matrix(W, k1d).T)     # (W, W): right-multiply (col blur)

    nc = N * C
    xr = x.reshape(nc, H, W)                              # metadata-only reshape

    bc = _pick_block_channels(nc, H, W, np.dtype(x.dtype).itemsize)
    grid = (pl.cdiv(nc, bc),)

    out = pl.pallas_call(
        _blur_kernel,
        out_shape=jax.ShapeDtypeStruct((nc, H, W), x.dtype),
        grid=grid,
        in_specs=[
            pl.BlockSpec((bc, H, W), lambda i: (i, 0, 0)),   # channel block
            pl.BlockSpec((H, H), lambda i: (0, 0)),          # By   (resident constant)
            pl.BlockSpec((W, W), lambda i: (0, 0)),          # BxT  (resident constant)
        ],
        out_specs=pl.BlockSpec((bc, H, W), lambda i: (i, 0, 0)),
        compiler_params=pltpu.CompilerParams(
            dimension_semantics=("parallel",),
        ),
    )(xr, by, bxt)
    return out.reshape(N, C, H, W)


def _reference_blur(x_np: np.ndarray, kernel_size: int, sigma: float) -> np.ndarray:
    """Direct reflect-pad + 2D conv reference (float64), matching torchvision."""
    k1d = _gaussian_kernel1d(kernel_size, sigma).astype(np.float64)
    k2d = np.outer(k1d, k1d)
    pad = kernel_size // 2
    xp = np.pad(x_np.astype(np.float64),
                ((0, 0), (0, 0), (pad, pad), (pad, pad)), mode="reflect")
    N, C, H, W = x_np.shape
    out = np.zeros((N, C, H, W), dtype=np.float64)
    for ki in range(kernel_size):
        for kj in range(kernel_size):
            out += k2d[ki, kj] * xp[:, :, ki:ki + H, kj:kj + W]
    return out.astype(x_np.dtype)


if __name__ == "__main__":
    key = jax.random.PRNGKey(0)
    N, C, H, W = 2, 4, 16, 16
    x = jax.random.uniform(key, (N, C, H, W), dtype=jnp.float32)

    # Module semantics: kernel_size=5, sigma=0.001 -> the Gaussian kernel is
    # numerically a delta, so blur(x) == x.
    y = gaussian_blur(x)
    jax.block_until_ready(y)
    assert y.shape == x.shape and y.dtype == x.dtype
    np.testing.assert_allclose(np.asarray(y), np.asarray(x), rtol=1e-3, atol=5e-3)

    # Exercise the real accumulation / reflect-padding path (per review) with a
    # non-degenerate sigma against a direct conv reference.
    y_wide = gaussian_blur(x, kernel_size=FILTER, sigma=1.0)
    jax.block_until_ready(y_wide)
    ref = _reference_blur(np.asarray(x), FILTER, 1.0)
    np.testing.assert_allclose(np.asarray(y_wide), ref, rtol=1e-3, atol=5e-3)

    print("KERNEL_OK")
</pallas_src>

<mosaic_0001>
module attributes {stable_mosaic.version = 11 : i64} {
  func.func @_blur_kernel(%arg0: i32, %arg1: memref<8x16x16xf32, #tpu.memory_space<vmem>>, %arg2: memref<16x16xf32, #tpu.memory_space<vmem>>, %arg3: memref<16x16xf32, #tpu.memory_space<vmem>>, %arg4: memref<8x16x16xf32, #tpu.memory_space<vmem>>) attributes {dimension_semantics = [#tpu.dimension_semantics<parallel>], iteration_bounds = array<i64: 1>, scalar_prefetch = 0 : i64, scratch_operands = 0 : i64, tpu.core_type = #tpu.core_type<tc>, window_params = [{transform_indices = @transform_0, window_bounds = array<i64: 8, 16, 16>}, {pipeline_mode = #tpu.pipeline_mode<synchronous>, transform_indices = @transform_1, window_bounds = array<i64: 16, 16>}, {pipeline_mode = #tpu.pipeline_mode<synchronous>, transform_indices = @transform_2, window_bounds = array<i64: 16, 16>}, {transform_indices = @transform_3, window_bounds = array<i64: 8, 16, 16>}]} {
    %c0 = arith.constant 0 : index
    %c0_0 = arith.constant 0 : index
    %c0_1 = arith.constant 0 : index
    %0 = vector.load %arg1[%c0, %c0_0, %c0_1] : memref<8x16x16xf32, #tpu.memory_space<vmem>>, vector<8x16x16xf32>
    %c0_2 = arith.constant 0 : index
    %c0_3 = arith.constant 0 : index
    %1 = vector.load %arg2[%c0_2, %c0_3] : memref<16x16xf32, #tpu.memory_space<vmem>>, vector<16x16xf32>
    %c0_4 = arith.constant 0 : index
    %c0_5 = arith.constant 0 : index
    %2 = vector.load %arg3[%c0_4, %c0_5] : memref<16x16xf32, #tpu.memory_space<vmem>>, vector<16x16xf32>
    %3 = vector.shape_cast %1 : vector<16x16xf32> to vector<1x16x16xf32>
    %4 = vector.broadcast %3 : vector<1x16x16xf32> to vector<8x16x16xf32>
    %5 = vector.shape_cast %2 : vector<16x16xf32> to vector<1x16x16xf32>
    %6 = vector.broadcast %5 : vector<1x16x16xf32> to vector<8x16x16xf32>
    "tpu.trace_start"() <{level = 10 : i32, message = "chw,cwv->chv"}> : () -> ()
    %cst = arith.constant dense<0.000000e+00> : vector<8x16x16xf32>
    %7 = tpu.matmul %0, %6, %cst {dimension_numbers = #tpu.dot_dimension_numbers<[2], [1], [1], [2], [0, 0, 0, 1, 1, 2], [0], [0]>} : vector<8x16x16xf32>, vector<8x16x16xf32>, vector<8x16x16xf32> -> vector<8x16x16xf32>
    "tpu.trace_stop"() : () -> ()
    "tpu.trace_start"() <{level = 10 : i32, message = "chr,crw->chw"}> : () -> ()
    %cst_6 = arith.constant dense<0.000000e+00> : vector<8x16x16xf32>
    %8 = tpu.matmul %4, %7, %cst_6 {dimension_numbers = #tpu.dot_dimension_numbers<[2], [1], [1], [2], [0, 0, 0, 1, 1, 2], [0], [0]>} : vector<8x16x16xf32>, vector<8x16x16xf32>, vector<8x16x16xf32> -> vector<8x16x16xf32>
    "tpu.trace_stop"() : () -> ()
    %c0_7 = arith.constant 0 : index
    %c0_8 = arith.constant 0 : index
    %c0_9 = arith.constant 0 : index
    %9 = vector.load %arg4[%c0_7, %c0_8, %c0_9] : memref<8x16x16xf32, #tpu.memory_space<vmem>>, vector<8x16x16xf32>
    tpu.vector_store %arg4[%c0_7, %c0_8, %c0_9], %8 {strides = array<i32>} : memref<8x16x16xf32, #tpu.memory_space<vmem>>, vector<8x16x16xf32>,
    return
  }
  func.func @transform_0(%arg0: i32) -> (i32, i32, i32) {
    %c0_i32 = arith.constant 0 : i32
    %c0_i32_0 = arith.constant 0 : i32
    %c0_i32_1 = arith.constant 0 : i32
    return %arg0, %c0_i32, %c0_i32_0 : i32, i32, i32
  }
  func.func @transform_1(%arg0: i32) -> (i32, i32) {
    %c0_i32 = arith.constant 0 : i32
    %c0_i32_0 = arith.constant 0 : i32
    %c0_i32_1 = arith.constant 0 : i32
    return %c0_i32, %c0_i32_0 : i32, i32
  }
  func.func @transform_2(%arg0: i32) -> (i32, i32) {
    %c0_i32 = arith.constant 0 : i32
    %c0_i32_0 = arith.constant 0 : i32
    %c0_i32_1 = arith.constant 0 : i32
    return %c0_i32, %c0_i32_0 : i32, i32
  }
  func.func @transform_3(%arg0: i32) -> (i32, i32, i32) {
    %c0_i32 = arith.constant 0 : i32
    %c0_i32_0 = arith.constant 0 : i32
    %c0_i32_1 = arith.constant 0 : i32
    return %arg0, %c0_i32, %c0_i32_0 : i32, i32, i32
  }
}

</mosaic_0001>

<llo_original>
// kernel: tpu_custom_call.1
$region0: #{tpu_custom_call.1}
  #allocation0 [shape = 'u32[]', space=smem, size = 0x4, offset = 0x4, fixed_abs, tag = 'smem constant byte address 0x4 - core index']
  #allocation1 [shape = 'u32[144,128]{1,0:T(1,128)}', space=vmem, size = 0x12000, scoped, tag = 'internal scratch']
  %s0 = inlined_call_operand.hbm [shape: f32[8,16,16], index: 0, kind: input, shape index: {}]
  %s1 = inlined_call_operand.hbm [shape: f32[16,16], index: 1, kind: input, shape index: {}]
  %s2 = inlined_call_operand.hbm [shape: f32[16,16], index: 2, kind: input, shape index: {}]
  %s3 = inlined_call_operand.hbm [shape: f32[8,16,16], index: 3, kind: output, shape index: {}]
  %s4 = sld [smem:[#allocation0]]
  $region34: #{tpu_custom_call.1} parent=0
    _
  %s6 = ssub.s32 1, %s4
  %s7 = scalar_select 0, %s6, %s4
  $region1: #{tpu_custom_call.1} parent=0
    #allocation2 [shape = 'u8[65536]{0}', space=vmem, size = 0x10000, scoped, tag = 'input window, operand 0, single buffered']
    #allocation3 [shape = 's32[1]{0}', space=sflag, size = 0x4, scoped, tag = 'scoped memory for tpu_custom_call.1']
    #allocation4 [shape = 's32[1]{0}', space=sflag, size = 0x4, scoped, tag = 'scoped memory for tpu_custom_call.1']
    #allocation5 [shape = 'u8[8192]{0}', space=vmem, size = 0x2000, scoped, tag = 'input window, operand 1, single buffered']
    #allocation6 [shape = 's32[1]{0}', space=sflag, size = 0x4, scoped, tag = 'scoped memory for tpu_custom_call.1']
    #allocation7 [shape = 'u8[8192]{0}', space=vmem, size = 0x2000, scoped, tag = 'input window, operand 2, single buffered']
    #allocation8 [shape = 'u8[65536]{0}', space=vmem, size = 0x10000, scoped, tag = 'output window, operand 0, single buffered']
    %8 = vsyncpa [#allocation3], 0
    %9 = vsyncpa [#allocation6], 0
    %10 = vsyncpa [#allocation4], 0
    // Predicated region
    $region2: #{tpu_custom_call.1} parent=1 // pred_check
      _
    $region3: #{tpu_custom_call.1} parent=1 // pred_check_branch
      %12 = sbr.rel (0) target = $region5
    $region4: #{tpu_custom_call.1} parent=1 // pred_region
      %s14 = ssub.s32 2048, 2048
      %15 = vsyncadd [#allocation3], %s14
      %s16 = sshll.u32 [#allocation2], 4
      %s17 = int_to_ptr.vmem [resolvable:$true] %s16
      %22 = dma.hbm_to_vmem [thread:$0]  %s0, 2048, %s17, [#allocation3], 128, 128, 8
    $region5: #{tpu_custom_call.1} parent=1 // pred_fallthru
      _
    // Predicated region
    $region6: #{tpu_custom_call.1} parent=1 // pred_check
      _
    $region7: #{tpu_custom_call.1} parent=1 // pred_check_branch
      %24 = sbr.rel (0) target = $region9
    $region8: #{tpu_custom_call.1} parent=1 // pred_region
      %s26 = ssub.s32 256, 256
      %27 = vsyncadd [#allocation6], %s26
      %s28 = sshll.u32 [#allocation5], 4
      %s29 = int_to_ptr.vmem [resolvable:$true] %s28
      %34 = dma.hbm_to_vmem [thread:$0]  %s1, 256, %s29, [#allocation6], 128, 128, 8
    $region9: #{tpu_custom_call.1} parent=1 // pred_fallthru
      _
    // Predicated region
    $region10: #{tpu_custom_call.1} parent=1 // pred_check
      _
    $region11: #{tpu_custom_call.1} parent=1 // pred_check_branch
      %36 = sbr.rel (0) target = $region13
    $region12: #{tpu_custom_call.1} parent=1 // pred_region
      %s38 = ssub.s32 256, 256
      %39 = vsyncadd [#allocation6], %s38
      %s40 = sshll.u32 [#allocation7], 4
      %s41 = int_to_ptr.vmem [resolvable:$true] %s40
      %46 = dma.hbm_to_vmem [thread:$0]  %s2, 256, %s41, [#allocation6], 128, 128, 8
    $region13: #{tpu_custom_call.1} parent=1 // pred_fallthru
      _
    // Predicated region
    $region14: #{tpu_custom_call.1} parent=1 // pred_check
      _
    $region15: #{tpu_custom_call.1} parent=1 // pred_check_branch
      %48 = sbr.rel (0) target = $region17
    $region16: #{tpu_custom_call.1} parent=1 // pred_region
      %49 = dma.done [#allocation3], 2048
    $region17: #{tpu_custom_call.1} parent=1 // pred_fallthru
      _
    // Predicated region
    $region18: #{tpu_custom_call.1} parent=1 // pred_check
      _
    $region19: #{tpu_custom_call.1} parent=1 // pred_check_branch
      %51 = sbr.rel (0) target = $region21
    $region20: #{tpu_custom_call.1} parent=1 // pred_region
      %52 = dma.done [#allocation6], 256
    $region21: #{tpu_custom_call.1} parent=1 // pred_fallthru
      _
    // Predicated region
    $region22: #{tpu_custom_call.1} parent=1 // pred_check
      _
    $region23: #{tpu_custom_call.1} parent=1 // pred_check_branch
      %54 = sbr.rel (0) target = $region25
    $region24: #{tpu_custom_call.1} parent=1 // pred_region
      %55 = dma.done [#allocation6], 256
    $region25: #{tpu_custom_call.1} parent=1 // pred_fallthru
      _
    %v56 = vld [vmem:[#allocation2] sm:$0xff]
    %v57 = vld [vmem:[#allocation2 + $0x8] sm:$0xff]
    %v58 = vld [vmem:[#allocation2 + $0x10] sm:$0xff]
    %v59 = vld [vmem:[#allocation2 + $0x18] sm:$0xff]
    %v60 = vld [vmem:[#allocation2 + $0x20] sm:$0xff]
    %v61 = vld [vmem:[#allocation2 + $0x28] sm:$0xff]
    %v62 = vld [vmem:[#allocation2 + $0x30] sm:$0xff]
    %v63 = vld [vmem:[#allocation2 + $0x38] sm:$0xff]
    %v64 = vld [vmem:[#allocation2 + $0x40] sm:$0xff]
    %v65 = vld [vmem:[#allocation2 + $0x48] sm:$0xff]
    %v66 = vld [vmem:[#allocation2 + $0x50] sm:$0xff]
    %v67 = vld [vmem:[#allocation2 + $0x58] sm:$0xff]
    %v68 = vld [vmem:[#allocation2 + $0x60] sm:$0xff]
    %v69 = vld [vmem:[#allocation2 + $0x68] sm:$0xff]
    %v70 = vld [vmem:[#allocation2 + $0x70] sm:$0xff]
    %v71 = vld [vmem:[#allocation2 + $0x78] sm:$0xff]
    %v72 = vld [vmem:[#allocation5] sm:$0xff]
    %v73 = vld [vmem:[#allocation5 + $0x8] sm:$0xff]
    %v74 = vld [vmem:[#allocation7] sm:$0xff]
    %v75 = vld [vmem:[#allocation7 + $0x8] sm:$0xff]
    %vm76 = vcmask 130048
    %v78 = vsel %vm76, %v56, 0
    %v81 = vsel %vm76, %v57, 0
    %83 = vmatprep.subr.mxu0 0.0
    %84 = vmatpush1.msra.mxu0 %v74
    %85 = vmatprep.subr.mxu0 0.0
    %86 = vmatpush1.msra.mxu0 %v75
    %87 = vmatprep.subr.mxu0 0.0
    %88 = vmatpush1.msra.mxu0 0.0
    %89 = vmatprep.subr.mxu0 0.0
    %90 = vmatpush1.msra.mxu0 0.0
    %91 = vmatprep.subr.mxu0 0.0
    %92 = vmatpush1.msra.mxu0 0.0
    %93 = vmatprep.subr.mxu0 0.0
    %94 = vmatpush1.msra.mxu0 0.0
    %95 = vmatprep.subr.mxu0 0.0
    %96 = vmatpush1.msra.mxu0 0.0
    %97 = vmatprep.subr.mxu0 0.0
    %98 = vmatpush1.msra.mxu0 0.0
    %99 = vmatprep.subr.mxu0 0.0
    %100 = vmatpush1.msra.mxu0 0.0
    %101 = vmatprep.subr.mxu0 0.0
    %102 = vmatpush1.msra.mxu0 0.0
    %103 = vmatprep.subr.mxu0 0.0
    %104 = vmatpush1.msra.mxu0 0.0
    %105 = vmatprep.subr.mxu0 0.0
    %106 = vmatpush1.msra.mxu0 0.0
    %107 = vmatprep.subr.mxu0 0.0
    %108 = vmatpush1.msra.mxu0 0.0
    %109 = vmatprep.subr.mxu0 0.0
    %110 = vmatpush1.msra.mxu0 0.0
    %111 = vmatprep.subr.mxu0 0.0
    %112 = vmatpush1.msra.mxu0 0.0
    %113 = vmatprep.subr.mxu0 0.0
    %114 = vmatpush1.msra.mxu0 0.0
    %115 = vmatprep.subr.mxu0 0.0
    %116 = vmatpush1.msra.mxu0 0.0
    %117 = vmatprep.subr.mxu0 0.0
    %118 = vmatpush1.msra.mxu0 0.0
    %119 = vmatprep.subr.mxu0 0.0
    %120 = vmatpush1.msra.mxu0 0.0
    %121 = vmatprep.subr.mxu0 0.0
    %122 = vmatpush1.msra.mxu0 0.0
    %123 = vmatprep.subr.mxu0 0.0
    %124 = vmatpush1.msra.mxu0 0.0
    %125 = vmatprep.subr.mxu0 0.0
    %126 = vmatpush1.msra.mxu0 0.0
    %127 = vmatprep.subr.mxu0 0.0
    %128 = vmatpush1.msra.mxu0 0.0
    %129 = vmatprep.subr.mxu0 0.0
    %130 = vmatpush1.msra.mxu0 0.0
    %131 = vmatprep.subr.mxu0 0.0
    %132 = vmatpush1.msra.mxu0 0.0
    %133 = vmatprep.subr.mxu0 0.0
    %134 = vmatpush1.msra.mxu0 0.0
    %135 = vmatprep.subr.mxu0 0.0
    %136 = vmatpush1.msra.mxu0 0.0
    %137 = vmatprep.subr.mxu0 0.0
    %138 = vmatpush1.msra.mxu0 0.0
    %139 = vmatprep.subr.mxu0 0.0
    %140 = vmatpush1.msra.mxu0 0.0
    %141 = vmatprep.subr.mxu0 0.0
    %142 = vmatpush1.msra.mxu0 0.0
    %143 = vmatprep.subr.mxu0 0.0
    %144 = vmatpush1.msra.mxu0 0.0
    %145 = vmatprep.subr.mxu0 0.0
    %146 = vmatpush1.msra.mxu0 0.0
    %147 = vmatprep.mubr.f32.mxu0 0.0
    %148 = vmatmul.mubr.f32.gmra.mrb[0].mxu0 %v78
    %v149 = vpop.f32.mrb[0].mxu0
    %v150 = vadd.f32 0.0, %v149
    %v151 = vpop.f32.mrb[0].mxu0
    %152 = vmatprep.mubr.f32.mxu0 0.0
    %153 = vmatmul.mubr.f32.gmra.mrb[0].mxu0 %v81
    %v154 = vpop.f32.mrb[0].mxu0
    %v155 = vadd.f32 0.0, %v154
    %v156 = vpop.f32.mrb[0].mxu0
    %157 = vdwg.mxu0
    %v159 = vsel %vm76, %v58, 0
    %v162 = vsel %vm76, %v59, 0
    %164 = vmatprep.subr.mxu0 0.0
    %165 = vmatpush1.msra.mxu0 %v74
    %166 = vmatprep.subr.mxu0 0.0
    %167 = vmatpush1.msra.mxu0 %v75
    %168 = vmatprep.subr.mxu0 0.0
    %169 = vmatpush1.msra.mxu0 0.0
    %170 = vmatprep.subr.mxu0 0.0
    %171 = vmatpush1.msra.mxu0 0.0
    %172 = vmatprep.subr.mxu0 0.0
    %173 = vmatpush1.msra.mxu0 0.0
    %174 = vmatprep.subr.mxu0 0.0
    %175 = vmatpush1.msra.mxu0 0.0
    %176 = vmatprep.subr.mxu0 0.0
    %177 = vmatpush1.msra.mxu0 0.0
    %178 = vmatprep.subr.mxu0 0.0
    %179 = vmatpush1.msra.mxu0 0.0
    %180 = vmatprep.subr.mxu0 0.0
    %181 = vmatpush1.msra.mxu0 0.0
    %182 = vmatprep.subr.mxu0 0.0
    %183 = vmatpush1.msra.mxu0 0.0
    %184 = vmatprep.subr.mxu0 0.0
    %185 = vmatpush1.msra.mxu0 0.0
    %186 = vmatprep.subr.mxu0 0.0
    %187 = vmatpush1.msra.mxu0 0.0
    %188 = vmatprep.subr.mxu0 0.0
    %189 = vmatpush1.msra.mxu0 0.0
    %190 = vmatprep.subr.mxu0 0.0
    %191 = vmatpush1.msra.mxu0 0.0
    %192 = vmatprep.subr.mxu0 0.0
    %193 = vmatpush1.msra.mxu0 0.0
    %194 = vmatprep.subr.mxu0 0.0
    %195 = vmatpush1.msra.mxu0 0.0
    %196 = vmatprep.subr.mxu0 0.0
    %197 = vmatpush1.msra.mxu0 0.0
    %198 = vmatprep.subr.mxu0 0.0
    %199 = vmatpush1.msra.mxu0 0.0
    %200 = vmatprep.subr.mxu0 0.0
    %201 = vmatpush1.msra.mxu0 0.0
    %202 = vmatprep.subr.mxu0 0.0
    %203 = vmatpush1.msra.mxu0 0.0
    %204 = vmatprep.subr.mxu0 0.0
    %205 = vmatpush1.msra.mxu0 0.0
    %206 = vmatprep.subr.mxu0 0.0
    %207 = vmatpush1.msra.mxu0 0.0
    %208 = vmatprep.subr.mxu0 0.0
    %209 = vmatpush1.msra.mxu0 0.0
    %210 = vmatprep.subr.mxu0 0.0
    %211 = vmatpush1.msra.mxu0 0.0
    %212 = vmatprep.subr.mxu0 0.0
    %213 = vmatpush1.msra.mxu0 0.0
    %214 = vmatprep.subr.mxu0 0.0
    %215 = vmatpush1.msra.mxu0 0.0
    %216 = vmatprep.subr.mxu0 0.0
    %217 = vmatpush1.msra.mxu0 0.0
    %218 = vmatprep.subr.mxu0 0.0
    %219 = vmatpush1.msra.mxu0 0.0
    %220 = vmatprep.subr.mxu0 0.0
    %221 = vmatpush1.msra.mxu0 0.0
    %222 = vmatprep.subr.mxu0 0.0
    %223 = vmatpush1.msra.mxu0 0.0
    %224 = vmatprep.subr.mxu0 0.0
    %225 = vmatpush1.msra.mxu0 0.0
    %226 = vmatprep.subr.mxu0 0.0
    %227 = vmatpush1.msra.mxu0 0.0
    %228 = vmatprep.mubr.f32.mxu0 0.0
    %229 = vmatmul.mubr.f32.gmra.mrb[0].mxu0 %v159
    %v230 = vpop.f32.mrb[0].mxu0
    %v231 = vadd.f32 0.0, %v230
    %v232 = vpop.f32.mrb[0].mxu0
    %233 = vmatprep.mubr.f32.mxu0 0.0
    %234 = vmatmul.mubr.f32.gmra.mrb[0].mxu0 %v162
    %v235 = vpop.f32.mrb[0].mxu0
    %v236 = vadd.f32 0.0, %v235
    %v237 = vpop.f32.mrb[0].mxu0
    %238 = vdwg.mxu0
    %v240 = vsel %vm76, %v60, 0
    %v243 = vsel %vm76, %v61, 0
    %245 = vmatprep.subr.mxu0 0.0
    %246 = vmatpush1.msra.mxu0 %v74
    %247 = vmatprep.subr.mxu0 0.0
    %248 = vmatpush1.msra.mxu0 %v75
    %249 = vmatprep.subr.mxu0 0.0
    %250 = vmatpush1.msra.mxu0 0.0
    %251 = vmatprep.subr.mxu0 0.0
    %252 = vmatpush1.msra.mxu0 0.0
    %253 = vmatprep.subr.mxu0 0.0
    %254 = vmatpush1.msra.mxu0 0.0
    %255 = vmatprep.subr.mxu0 0.0
    %256 = vmatpush1.msra.mxu0 0.0
    %257 = vmatprep.subr.mxu0 0.0
    %258 = vmatpush1.msra.mxu0 0.0
    %259 = vmatprep.subr.mxu0 0.0
    %260 = vmatpush1.msra.mxu0 0.0
    %261 = vmatprep.subr.mxu0 0.0
    %262 = vmatpush1.msra.mxu0 0.0
    %263 = vmatprep.subr.mxu0 0.0
    %264 = vmatpush1.msra.mxu0 0.0
    %265 = vmatprep.subr.mxu0 0.0
    %266 = vmatpush1.msra.mxu0 0.0
    %267 = vmatprep.subr.mxu0 0.0
    %268 = vmatpush1.msra.mxu0 0.0
    %269 = vmatprep.subr.mxu0 0.0
    %270 = vmatpush1.msra.mxu0 0.0
    %271 = vmatprep.subr.mxu0 0.0
    %272 = vmatpush1.msra.mxu0 0.0
    %273 = vmatprep.subr.mxu0 0.0
    %274 = vmatpush1.msra.mxu0 0.0
    %275 = vmatprep.subr.mxu0 0.0
    %276 = vmatpush1.msra.mxu0 0.0
    %277 = vmatprep.subr.mxu0 0.0
    %278 = vmatpush1.msra.mxu0 0.0
    %279 = vmatprep.subr.mxu0 0.0
    %280 = vmatpush1.msra.mxu0 0.0
    %281 = vmatprep.subr.mxu0 0.0
    %282 = vmatpush1.msra.mxu0 0.0
    %283 = vmatprep.subr.mxu0 0.0
    %284 = vmatpush1.msra.mxu0 0.0
    %285 = vmatprep.subr.mxu0 0.0
    %286 = vmatpush1.msra.mxu0 0.0
    %287 = vmatprep.subr.mxu0 0.0
    %288 = vmatpush1.msra.mxu0 0.0
    %289 = vmatprep.subr.mxu0 0.0
    %290 = vmatpush1.msra.mxu0 0.0
    %291 = vmatprep.subr.mxu0 0.0
    %292 = vmatpush1.msra.mxu0 0.0
    %293 = vmatprep.subr.mxu0 0.0
    %294 = vmatpush1.msra.mxu0 0.0
    %295 = vmatprep.subr.mxu0 0.0
    %296 = vmatpush1.msra.mxu0 0.0
    %297 = vmatprep.subr.mxu0 0.0
    %298 = vmatpush1.msra.mxu0 0.0
    %299 = vmatprep.subr.mxu0 0.0
    %300 = vmatpush1.msra.mxu0 0.0
    %301 = vmatprep.subr.mxu0 0.0
    %302 = vmatpush1.msra.mxu0 0.0
    %303 = vmatprep.subr.mxu0 0.0
    %304 = vmatpush1.msra.mxu0 0.0
    %305 = vmatprep.subr.mxu0 0.0
    %306 = vmatpush1.msra.mxu0 0.0
    %307 = vmatprep.subr.mxu0 0.0
    %308 = vmatpush1.msra.mxu0 0.0
    %309 = vmatprep.mubr.f32.mxu0 0.0
    %310 = vmatmul.mubr.f32.gmra.mrb[0].mxu0 %v240
    %v311 = vpop.f32.mrb[0].mxu0
    %v312 = vadd.f32 0.0, %v311
    %v313 = vpop.f32.mrb[0].mxu0
    %314 = vmatprep.mubr.f32.mxu0 0.0
    %315 = vmatmul.mubr.f32.gmra.mrb[0].mxu0 %v243
    %v316 = vpop.f32.mrb[0].mxu0
    %v317 = vadd.f32 0.0, %v316
    %v318 = vpop.f32.mrb[0].mxu0
    %319 = vdwg.mxu0
    %v321 = vsel %vm76, %v62, 0
    %v324 = vsel %vm76, %v63, 0
    %326 = vmatprep.subr.mxu0 0.0
    %327 = vmatpush1.msra.mxu0 %v74
    %328 = vmatprep.subr.mxu0 0.0
    %329 = vmatpush1.msra.mxu0 %v75
    %330 = vmatprep.subr.mxu0 0.0
    %331 = vmatpush1.msra.mxu0 0.0
    %332 = vmatprep.subr.mxu0 0.0
    %333 = vmatpush1.msra.mxu0 0.0
    %334 = vmatprep.subr.mxu0 0.0
    %335 = vmatpush1.msra.mxu0 0.0
    %336 = vmatprep.subr.mxu0 0.0
    %337 = vmatpush1.msra.mxu0 0.0
    %338 = vmatprep.subr.mxu0 0.0
    %339 = vmatpush1.msra.mxu0 0.0
    %340 = vmatprep.subr.mxu0 0.0
    %341 = vmatpush1.msra.mxu0 0.0
    %342 = vmatprep.subr.mxu0 0.0
    %343 = vmatpush1.msra.mxu0 0.0
    %344 = vmatprep.subr.mxu0 0.0
    %345 = vmatpush1.msra.mxu0 0.0
    %346 = vmatprep.subr.mxu0 0.0
    %347 = vmatpush1.msra.mxu0 0.0
    %348 = vmatprep.subr.mxu0 0.0
    %349 = vmatpush1.msra.mxu0 0.0
    %350 = vmatprep.subr.mxu0 0.0
    %351 = vmatpush1.msra.mxu0 0.0
    %352 = vmatprep.subr.mxu0 0.0
    %353 = vmatpush1.msra.mxu0 0.0
    %354 = vmatprep.subr.mxu0 0.0
    %355 = vmatpush1.msra.mxu0 0.0
    %356 = vmatprep.subr.mxu0 0.0
    %357 = vmatpush1.msra.mxu0 0.0
    %358 = vmatprep.subr.mxu0 0.0
    %359 = vmatpush1.msra.mxu0 0.0
    %360 = vmatprep.subr.mxu0 0.0
    %361 = vmatpush1.msra.mxu0 0.0
    %362 = vmatprep.subr.mxu0 0.0
    %363 = vmatpush1.msra.mxu0 0.0
    %364 = vmatprep.subr.mxu0 0.0
    %365 = vmatpush1.msra.mxu0 0.0
    %366 = vmatprep.subr.mxu0 0.0
    %367 = vmatpush1.msra.mxu0 0.0
    %368 = vmatprep.subr.mxu0 0.0
    %369 = vmatpush1.msra.mxu0 0.0
    %370 = vmatprep.subr.mxu0 0.0
    %371 = vmatpush1.msra.mxu0 0.0
    %372 = vmatprep.subr.mxu0 0.0
    %373 = vmatpush1.msra.mxu0 0.0
    %374 = vmatprep.subr.mxu0 0.0
    %375 = vmatpush1.msra.mxu0 0.0
    %376 = vmatprep.subr.mxu0 0.0
    %377 = vmatpush1.msra.mxu0 0.0
    %378 = vmatprep.subr.mxu0 0.0
    %379 = vmatpush1.msra.mxu0 0.0
    %380 = vmatprep.subr.mxu0 0.0
    %381 = vmatpush1.msra.mxu0 0.0
    %382 = vmatprep.subr.mxu0 0.0
    %383 = vmatpush1.msra.mxu0 0.0
    %384 = vmatprep.subr.mxu0 0.0
    %385 = vmatpush1.msra.mxu0 0.0
    %386 = vmatprep.subr.mxu0 0.0
    %387 = vmatpush1.msra.mxu0 0.0
    %388 = vmatprep.subr.mxu0 0.0
    %389 = vmatpush1.msra.mxu0 0.0
    %390 = vmatprep.mubr.f32.mxu0 0.0
    %391 = vmatmul.mubr.f32.gmra.mrb[0].mxu0 %v321
    %v392 = vpop.f32.mrb[0].mxu0
    %v393 = vadd.f32 0.0, %v392
    %v394 = vpop.f32.mrb[0].mxu0
    %395 = vmatprep.mubr.f32.mxu0 0.0
    %396 = vmatmul.mubr.f32.gmra.mrb[0].mxu0 %v324
    %v397 = vpop.f32.mrb[0].mxu0
    %v398 = vadd.f32 0.0, %v397
    %v399 = vpop.f32.mrb[0].mxu0
    %400 = vdwg.mxu0
    %v402 = vsel %vm76, %v64, 0
    %v405 = vsel %vm76, %v65, 0
    %407 = vmatprep.subr.mxu0 0.0
    %408 = vmatpush1.msra.mxu0 %v74
    %409 = vmatprep.subr.mxu0 0.0
    %410 = vmatpush1.msra.mxu0 %v75
    %411 = vmatprep.subr.mxu0 0.0
    %412 = vmatpush1.msra.mxu0 0.0
    %413 = vmatprep.subr.mxu0 0.0
    %414 = vmatpush1.msra.mxu0 0.0
    %415 = vmatprep.subr.mxu0 0.0
    %416 = vmatpush1.msra.mxu0 0.0
    %417 = vmatprep.subr.mxu0 0.0
    %418 = vmatpush1.msra.mxu0 0.0
    %419 = vmatprep.subr.mxu0 0.0
    %420 = vmatpush1.msra.mxu0 0.0
    %421 = vmatprep.subr.mxu0 0.0
    %422 = vmatpush1.msra.mxu0 0.0
    %423 = vmatprep.subr.mxu0 0.0
    %424 = vmatpush1.msra.mxu0 0.0
    %425 = vmatprep.subr.mxu0 0.0
    %426 = vmatpush1.msra.mxu0 0.0
    %427 = vmatprep.subr.mxu0 0.0
    %428 = vmatpush1.msra.mxu0 0.0
    %429 = vmatprep.subr.mxu0 0.0
    %430 = vmatpush1.msra.mxu0 0.0
    %431 = vmatprep.subr.mxu0 0.0
    %432 = vmatpush1.msra.mxu0 0.0
    %433 = vmatprep.subr.mxu0 0.0
    %434 = vmatpush1.msra.mxu0 0.0
    %435 = vmatprep.subr.mxu0 0.0
    %436 = vmatpush1.msra.mxu0 0.0
    %437 = vmatprep.subr.mxu0 0.0
    %438 = vmatpush1.msra.mxu0 0.0
    %439 = vmatprep.subr.mxu0 0.0
    %440 = vmatpush1.msra.mxu0 0.0
    %441 = vmatprep.subr.mxu0 0.0
    %442 = vmatpush1.msra.mxu0 0.0
    %443 = vmatprep.subr.mxu0 0.0
    %444 = vmatpush1.msra.mxu0 0.0
    %445 = vmatprep.subr.mxu0 0.0
    %446 = vmatpush1.msra.mxu0 0.0
    %447 = vmatprep.subr.mxu0 0.0
    %448 = vmatpush1.msra.mxu0 0.0
    %449 = vmatprep.subr.mxu0 0.0
    %450 = vmatpush1.msra.mxu0 0.0
    %451 = vmatprep.subr.mxu0 0.0
    %452 = vmatpush1.msra.mxu0 0.0
    %453 = vmatprep.subr.mxu0 0.0
    %454 = vmatpush1.msra.mxu0 0.0
    %455 = vmatprep.subr.mxu0 0.0
    %456 = vmatpush1.msra.mxu0 0.0
    %457 = vmatprep.subr.mxu0 0.0
    %458 = vmatpush1.msra.mxu0 0.0
    %459 = vmatprep.subr.mxu0 0.0
    %460 = vmatpush1.msra.mxu0 0.0
    %461 = vmatprep.subr.mxu0 0.0
    %462 = vmatpush1.msra.mxu0 0.0
    %463 = vmatprep.subr.mxu0 0.0
    %464 = vmatpush1.msra.mxu0 0.0
    %465 = vmatprep.subr.mxu0 0.0
    %466 = vmatpush1.msra.mxu0 0.0
    %467 = vmatprep.subr.mxu0 0.0
    %468 = vmatpush1.msra.mxu0 0.0
    %469 = vmatprep.subr.mxu0 0.0
    %470 = vmatpush1.msra.mxu0 0.0
    %471 = vmatprep.mubr.f32.mxu0 0.0
    %472 = vmatmul.mubr.f32.gmra.mrb[0].mxu0 %v402
    %v473 = vpop.f32.mrb[0].mxu0
    %v474 = vadd.f32 0.0, %v473
    %v475 = vpop.f32.mrb[0].mxu0
    %476 = vmatprep.mubr.f32.mxu0 0.0
    %477 = vmatmul.mubr.f32.gmra.mrb[0].mxu0 %v405
    %v478 = vpop.f32.mrb[0].mxu0
    %v479 = vadd.f32 0.0, %v478
    %v480 = vpop.f32.mrb[0].mxu0
    %481 = vdwg.mxu0
    %v483 = vsel %vm76, %v66, 0
    %v486 = vsel %vm76, %v67, 0
    %488 = vmatprep.subr.mxu0 0.0
    %489 = vmatpush1.msra.mxu0 %v74
    %490 = vmatprep.subr.mxu0 0.0
    %491 = vmatpush1.msra.mxu0 %v75
    %492 = vmatprep.subr.mxu0 0.0
    %493 = vmatpush1.msra.mxu0 0.0
    %494 = vmatprep.subr.mxu0 0.0
    %495 = vmatpush1.msra.mxu0 0.0
    %496 = vmatprep.subr.mxu0 0.0
    %497 = vmatpush1.msra.mxu0 0.0
    %498 = vmatprep.subr.mxu0 0.0
    %499 = vmatpush1.msra.mxu0 0.0
    %500 = vmatprep.subr.mxu0 0.0
    %501 = vmatpush1.msra.mxu0 0.0
    %502 = vmatprep.subr.mxu0 0.0
    %503 = vmatpush1.msra.mxu0 0.0
    %504 = vmatprep.subr.mxu0 0.0
    %505 = vmatpush1.msra.mxu0 0.0
    %506 = vmatprep.subr.mxu0 0.0
    %507 = vmatpush1.msra.mxu0 0.0
    %508 = vmatprep.subr.mxu0 0.0
    %509 = vmatpush1.msra.mxu0 0.0
    %510 = vmatprep.subr.mxu0 0.0
    %511 = vmatpush1.msra.mxu0 0.0
    %512 = vmatprep.subr.mxu0 0.0
    %513 = vmatpush1.msra.mxu0 0.0
    %514 = vmatprep.subr.mxu0 0.0
    %515 = vmatpush1.msra.mxu0 0.0
    %516 = vmatprep.subr.mxu0 0.0
    %517 = vmatpush1.msra.mxu0 0.0
    %518 = vmatprep.subr.mxu0 0.0
    %519 = vmatpush1.msra.mxu0 0.0
    %520 = vmatprep.subr.mxu0 0.0
    %521 = vmatpush1.msra.mxu0 0.0
    %522 = vmatprep.subr.mxu0 0.0
    %523 = vmatpush1.msra.mxu0 0.0
    %524 = vmatprep.subr.mxu0 0.0
    %525 = vmatpush1.msra.mxu0 0.0
    %526 = vmatprep.subr.mxu0 0.0
    %527 = vmatpush1.msra.mxu0 0.0
    %528 = vmatprep.subr.mxu0 0.0
    %529 = vmatpush1.msra.mxu0 0.0
    %530 = vmatprep.subr.mxu0 0.0
    %531 = vmatpush1.msra.mxu0 0.0
    %532 = vmatprep.subr.mxu0 0.0
    %533 = vmatpush1.msra.mxu0 0.0
    %534 = vmatprep.subr.mxu0 0.0
    %535 = vmatpush1.msra.mxu0 0.0
    %536 = vmatprep.subr.mxu0 0.0
    %537 = vmatpush1.msra.mxu0 0.0
    %538 = vmatprep.subr.mxu0 0.0
    %539 = vmatpush1.msra.mxu0 0.0
    %540 = vmatprep.subr.mxu0 0.0
    %541 = vmatpush1.msra.mxu0 0.0
    %542 = vmatprep.subr.mxu0 0.0
    %543 = vmatpush1.msra.mxu0 0.0
    %544 = vmatprep.subr.mxu0 0.0
    %545 = vmatpush1.msra.mxu0 0.0
    %546 = vmatprep.subr.mxu0 0.0
    %547 = vmatpush1.msra.mxu0 0.0
    %548 = vmatprep.subr.mxu0 0.0
    %549 = vmatpush1.msra.mxu0 0.0
    %550 = vmatprep.subr.mxu0 0.0
    %551 = vmatpush1.msra.mxu0 0.0
    %552 = vmatprep.mubr.f32.mxu0 0.0
    %553 = vmatmul.mubr.f32.gmra.mrb[0].mxu0 %v483
    %v554 = vpop.f32.mrb[0].mxu0
    %v555 = vadd.f32 0.0, %v554
    %v556 = vpop.f32.mrb[0].mxu0
    %557 = vmatprep.mubr.f32.mxu0 0.0
    %558 = vmatmul.mubr.f32.gmra.mrb[0].mxu0 %v486
    %v559 = vpop.f32.mrb[0].mxu0
    %v560 = vadd.f32 0.0, %v559
    %v561 = vpop.f32.mrb[0].mxu0
    %562 = vdwg.mxu0
    %v564 = vsel %vm76, %v68, 0
    %v567 = vsel %vm76, %v69, 0
    %569 = vmatprep.subr.mxu0 0.0
    %570 = vmatpush1.msra.mxu0 %v74
    %571 = vmatprep.subr.mxu0 0.0
    %572 = vmatpush1.msra.mxu0 %v75
    %573 = vmatprep.subr.mxu0 0.0
    %574 = vmatpush1.msra.mxu0 0.0
    %575 = vmatprep.subr.mxu0 0.0
    %576 = vmatpush1.msra.mxu0 0.0
    %577 = vmatprep.subr.mxu0 0.0
    %578 = vmatpush1.msra.mxu0 0.0
    %579 = vmatprep.subr.mxu0 0.0
    %580 = vmatpush1.msra.mxu0 0.0
    %581 = vmatprep.subr.mxu0 0.0
    %582 = vmatpush1.msra.mxu0 0.0
    %583 = vmatprep.subr.mxu0 0.0
    %584 = vmatpush1.msra.mxu0 0.0
    %585 = vmatprep.subr.mxu0 0.0
    %586 = vmatpush1.msra.mxu0 0.0
    %587 = vmatprep.subr.mxu0 0.0
    %588 = vmatpush1.msra.mxu0 0.0
    %589 = vmatprep.subr.mxu0 0.0
    %590 = vmatpush1.msra.mxu0 0.0
    %591 = vmatprep.subr.mxu0 0.0
    %592 = vmatpush1.msra.mxu0 0.0
    %593 = vmatprep.subr.mxu0 0.0
    %594 = vmatpush1.msra.mxu0 0.0
    %595 = vmatprep.subr.mxu0 0.0
    %596 = vmatpush1.msra.mxu0 0.0
    %597 = vmatprep.subr.mxu0 0.0
    %598 = vmatpush1.msra.mxu0 0.0
    %599 = vmatprep.subr.mxu0 0.0
    %600 = vmatpush1.msra.mxu0 0.0
    %601 = vmatprep.subr.mxu0 0.0
    %602 = vmatpush1.msra.mxu0 0.0
    %603 = vmatprep.subr.mxu0 0.0
    %604 = vmatpush1.msra.mxu0 0.0
    %605 = vmatprep.subr.mxu0 0.0
    %606 = vmatpush1.msra.mxu0 0.0
    %607 = vmatprep.subr.mxu0 0.0
    %608 = vmatpush1.msra.mxu0 0.0
    %609 = vmatprep.subr.mxu0 0.0
    %610 = vmatpush1.msra.mxu0 0.0
    %611 = vmatprep.subr.mxu0 0.0
    %612 = vmatpush1.msra.mxu0 0.0
    %613 = vmatprep.subr.mxu0 0.0
    %614 = vmatpush1.msra.mxu0 0.0
    %615 = vmatprep.subr.mxu0 0.0
    %616 = vmatpush1.msra.mxu0 0.0
    %617 = vmatprep.subr.mxu0 0.0
    %618 = vmatpush1.msra.mxu0 0.0
    %619 = vmatprep.subr.mxu0 0.0
    %620 = vmatpush1.msra.mxu0 0.0
    %621 = vmatprep.subr.mxu0 0.0
    %622 = vmatpush1.msra.mxu0 0.0
    %623 = vmatprep.subr.mxu0 0.0
    %624 = vmatpush1.msra.mxu0 0.0
    %625 = vmatprep.subr.mxu0 0.0
    %626 = vmatpush1.msra.mxu0 0.0
    %627 = vmatprep.subr.mxu0 0.0
    %628 = vmatpush1.msra.mxu0 0.0
    %629 = vmatprep.subr.mxu0 0.0
    %630 = vmatpush1.msra.mxu0 0.0
    %631 = vmatprep.subr.mxu0 0.0
    %632 = vmatpush1.msra.mxu0 0.0
    %633 = vmatprep.mubr.f32.mxu0 0.0
    %634 = vmatmul.mubr.f32.gmra.mrb[0].mxu0 %v564
    %v635 = vpop.f32.mrb[0].mxu0
    %v636 = vadd.f32 0.0, %v635
    %v637 = vpop.f32.mrb[0].mxu0
    %638 = vmatprep.mubr.f32.mxu0 0.0
    %639 = vmatmul.mubr.f32.gmra.mrb[0].mxu0 %v567
    %v640 = vpop.f32.mrb[0].mxu0
    %v641 = vadd.f32 0.0, %v640
    %v642 = vpop.f32.mrb[0].mxu0
    %643 = vdwg.mxu0
    %v645 = vsel %vm76, %v70, 0
    %v648 = vsel %vm76, %v71, 0
    %650 = vmatprep.subr.mxu0 0.0
    %651 = vmatpush1.msra.mxu0 %v74
    %652 = vmatprep.subr.mxu0 0.0
    %653 = vmatpush1.msra.mxu0 %v75
    %654 = vmatprep.subr.mxu0 0.0
    %655 = vmatpush1.msra.mxu0 0.0
    %656 = vmatprep.subr.mxu0 0.0
    %657 = vmatpush1.msra.mxu0 0.0
    %658 = vmatprep.subr.mxu0 0.0
    %659 = vmatpush1.msra.mxu0 0.0
    %660 = vmatprep.subr.mxu0 0.0
    %661 = vmatpush1.msra.mxu0 0.0
    %662 = vmatprep.subr.mxu0 0.0
    %663 = vmatpush1.msra.mxu0 0.0
    %664 = vmatprep.subr.mxu0 0.0
    %665 = vmatpush1.msra.mxu0 0.0
    %666 = vmatprep.subr.mxu0 0.0
    %667 = vmatpush1.msra.mxu0 0.0
    %668 = vmatprep.subr.mxu0 0.0
    %669 = vmatpush1.msra.mxu0 0.0
    %670 = vmatprep.subr.mxu0 0.0
    %671 = vmatpush1.msra.mxu0 0.0
    %672 = vmatprep.subr.mxu0 0.0
    %673 = vmatpush1.msra.mxu0 0.0
    %674 = vmatprep.subr.mxu0 0.0
    %675 = vmatpush1.msra.mxu0 0.0
    %676 = vmatprep.subr.mxu0 0.0
    %677 = vmatpush1.msra.mxu0 0.0
    %678 = vmatprep.subr.mxu0 0.0
    %679 = vmatpush1.msra.mxu0 0.0
    %680 = vmatprep.subr.mxu0 0.0
    %681 = vmatpush1.msra.mxu0 0.0
    %682 = vmatprep.subr.mxu0 0.0
    %683 = vmatpush1.msra.mxu0 0.0
    %684 = vmatprep.subr.mxu0 0.0
    %685 = vmatpush1.msra.mxu0 0.0
    %686 = vmatprep.subr.mxu0 0.0
    %687 = vmatpush1.msra.mxu0 0.0
    %688 = vmatprep.subr.mxu0 0.0
    %689 = vmatpush1.msra.mxu0 0.0
    %690 = vmatprep.subr.mxu0 0.0
    %691 = vmatpush1.msra.mxu0 0.0
    %692 = vmatprep.subr.mxu0 0.0
    %693 = vmatpush1.msra.mxu0 0.0
    %694 = vmatprep.subr.mxu0 0.0
    %695 = vmatpush1.msra.mxu0 0.0
    %696 = vmatprep.subr.mxu0 0.0
    %697 = vmatpush1.msra.mxu0 0.0
    %698 = vmatprep.subr.mxu0 0.0
    %699 = vmatpush1.msra.mxu0 0.0
    %700 = vmatprep.subr.mxu0 0.0
    %701 = vmatpush1.msra.mxu0 0.0
    %702 = vmatprep.subr.mxu0 0.0
    %703 = vmatpush1.msra.mxu0 0.0
    %704 = vmatprep.subr.mxu0 0.0
    %705 = vmatpush1.msra.mxu0 0.0
    %706 = vmatprep.subr.mxu0 0.0
    %707 = vmatpush1.msra.mxu0 0.0
    %708 = vmatprep.subr.mxu0 0.0
    %709 = vmatpush1.msra.mxu0 0.0
    %710 = vmatprep.subr.mxu0 0.0
    %711 = vmatpush1.msra.mxu0 0.0
    %712 = vmatprep.subr.mxu0 0.0
    %713 = vmatpush1.msra.mxu0 0.0
    %714 = vmatprep.mubr.f32.mxu0 0.0
    %715 = vmatmul.mubr.f32.gmra.mrb[0].mxu0 %v645
    %v716 = vpop.f32.mrb[0].mxu0
    %v717 = vadd.f32 0.0, %v716
    %v718 = vpop.f32.mrb[0].mxu0
    %719 = vmatprep.mubr.f32.mxu0 0.0
    %720 = vmatmul.mubr.f32.gmra.mrb[0].mxu0 %v648
    %v721 = vpop.f32.mrb[0].mxu0
    %v722 = vadd.f32 0.0, %v721
    %v723 = vpop.f32.mrb[0].mxu0
    %724 = vdwg.mxu0
    %v726 = vsel %vm76, %v72, 0
    %v729 = vsel %vm76, %v73, 0
    %731 = vmatprep.subr.mxu0 0.0
    %732 = vmatpush1.msra.mxu0 %v150
    %733 = vmatprep.subr.mxu0 0.0
    %734 = vmatpush1.msra.mxu0 %v155
    %735 = vmatprep.subr.mxu0 0.0
    %736 = vmatpush1.msra.mxu0 0.0
    %737 = vmatprep.subr.mxu0 0.0
    %738 = vmatpush1.msra.mxu0 0.0
    %739 = vmatprep.subr.mxu0 0.0
    %740 = vmatpush1.msra.mxu0 0.0
    %741 = vmatprep.subr.mxu0 0.0
    %742 = vmatpush1.msra.mxu0 0.0
    %743 = vmatprep.subr.mxu0 0.0
    %744 = vmatpush1.msra.mxu0 0.0
    %745 = vmatprep.subr.mxu0 0.0
    %746 = vmatpush1.msra.mxu0 0.0
    %747 = vmatprep.subr.mxu0 0.0
    %748 = vmatpush1.msra.mxu0 0.0
    %749 = vmatprep.subr.mxu0 0.0
    %750 = vmatpush1.msra.mxu0 0.0
    %751 = vmatprep.subr.mxu0 0.0
    %752 = vmatpush1.msra.mxu0 0.0
    %753 = vmatprep.subr.mxu0 0.0
    %754 = vmatpush1.msra.mxu0 0.0
    %755 = vmatprep.subr.mxu0 0.0
    %756 = vmatpush1.msra.mxu0 0.0
    %757 = vmatprep.subr.mxu0 0.0
    %758 = vmatpush1.msra.mxu0 0.0
    %759 = vmatprep.subr.mxu0 0.0
    %760 = vmatpush1.msra.mxu0 0.0
    %761 = vmatprep.subr.mxu0 0.0
    %762 = vmatpush1.msra.mxu0 0.0
    %763 = vmatprep.subr.mxu0 0.0
    %764 = vmatpush1.msra.mxu0 0.0
    %765 = vmatprep.subr.mxu0 0.0
    %766 = vmatpush1.msra.mxu0 0.0
    %767 = vmatprep.subr.mxu0 0.0
    %768 = vmatpush1.msra.mxu0 0.0
    %769 = vmatprep.subr.mxu0 0.0
    %770 = vmatpush1.msra.mxu0 0.0
    %771 = vmatprep.subr.mxu0 0.0
    %772 = vmatpush1.msra.mxu0 0.0
    %773 = vmatprep.subr.mxu0 0.0
    %774 = vmatpush1.msra.mxu0 0.0
    %775 = vmatprep.subr.mxu0 0.0
    %776 = vmatpush1.msra.mxu0 0.0
    %777 = vmatprep.subr.mxu0 0.0
    %778 = vmatpush1.msra.mxu0 0.0
    %779 = vmatprep.subr.mxu0 0.0
    %780 = vmatpush1.msra.mxu0 0.0
    %781 = vmatprep.subr.mxu0 0.0
    %782 = vmatpush1.msra.mxu0 0.0
    %783 = vmatprep.subr.mxu0 0.0
    %784 = vmatpush1.msra.mxu0 0.0
    %785 = vmatprep.subr.mxu0 0.0
    %786 = vmatpush1.msra.mxu0 0.0
    %787 = vmatprep.subr.mxu0 0.0
    %788 = vmatpush1.msra.mxu0 0.0
    %789 = vmatprep.subr.mxu0 0.0
    %790 = vmatpush1.msra.mxu0 0.0
    %791 = vmatprep.subr.mxu0 0.0
    %792 = vmatpush1.msra.mxu0 0.0
    %793 = vmatprep.subr.mxu0 0.0
    %794 = vmatpush1.msra.mxu0 0.0
    %795 = vmatprep.mubr.f32.mxu0 0.0
    %796 = vmatmul.mubr.f32.gmra.mrb[0].mxu0 %v726
    %v797 = vpop.f32.mrb[0].mxu0
    %v798 = vadd.f32 0.0, %v797
    %v799 = vpop.f32.mrb[0].mxu0
    %800 = vmatprep.mubr.f32.mxu0 0.0
    %801 = vmatmul.mubr.f32.gmra.mrb[0].mxu0 %v729
    %v802 = vpop.f32.mrb[0].mxu0
    %v803 = vadd.f32 0.0, %v802
    %v804 = vpop.f32.mrb[0].mxu0
    %805 = vdwg.mxu0
    %806 = vmatprep.subr.mxu0 0.0
    %807 = vmatpush1.msra.mxu0 %v231
    %808 = vmatprep.subr.mxu0 0.0
    %809 = vmatpush1.msra.mxu0 %v236
    %810 = vmatprep.subr.mxu0 0.0
    %811 = vmatpush1.msra.mxu0 0.0
    %812 = vmatprep.subr.mxu0 0.0
    %813 = vmatpush1.msra.mxu0 0.0
    %814 = vmatprep.subr.mxu0 0.0
    %815 = vmatpush1.msra.mxu0 0.0
    %816 = vmatprep.subr.mxu0 0.0
    %817 = vmatpush1.msra.mxu0 0.0
    %818 = vmatprep.subr.mxu0 0.0
    %819 = vmatpush1.msra.mxu0 0.0
    %820 = vmatprep.subr.mxu0 0.0
    %821 = vmatpush1.msra.mxu0 0.0
    %822 = vmatprep.subr.mxu0 0.0
    %823 = vmatpush1.msra.mxu0 0.0
    %824 = vmatprep.subr.mxu0 0.0
    %825 = vmatpush1.msra.mxu0 0.0
    %826 = vmatprep.subr.mxu0 0.0
    %827 = vmatpush1.msra.mxu0 0.0
    %828 = vmatprep.subr.mxu0 0.0
    %829 = vmatpush1.msra.mxu0 0.0
    %830 = vmatprep.subr.mxu0 0.0
    %831 = vmatpush1.msra.mxu0 0.0
    %832 = vmatprep.subr.mxu0 0.0
    %833 = vmatpush1.msra.mxu0 0.0
    %834 = vmatprep.subr.mxu0 0.0
    %835 = vmatpush1.msra.mxu0 0.0
    %836 = vmatprep.subr.mxu0 0.0
    %837 = vmatpush1.msra.mxu0 0.0
    %838 = vmatprep.subr.mxu0 0.0
    %839 = vmatpush1.msra.mxu0 0.0
    %840 = vmatprep.subr.mxu0 0.0
    %841 = vmatpush1.msra.mxu0 0.0
    %842 = vmatprep.subr.mxu0 0.0
    %843 = vmatpush1.msra.mxu0 0.0
    %844 = vmatprep.subr.mxu0 0.0
    %845 = vmatpush1.msra.mxu0 0.0
    %846 = vmatprep.subr.mxu0 0.0
    %847 = vmatpush1.msra.mxu0 0.0
    %848 = vmatprep.subr.mxu0 0.0
    %849 = vmatpush1.msra.mxu0 0.0
    %850 = vmatprep.subr.mxu0 0.0
    %851 = vmatpush1.msra.mxu0 0.0
    %852 = vmatprep.subr.mxu0 0.0
    %853 = vmatpush1.msra.mxu0 0.0
    %854 = vmatprep.subr.mxu0 0.0
    %855 = vmatpush1.msra.mxu0 0.0
    %856 = vmatprep.subr.mxu0 0.0
    %857 = vmatpush1.msra.mxu0 0.0
    %858 = vmatprep.subr.mxu0 0.0
    %859 = vmatpush1.msra.mxu0 0.0
    %860 = vmatprep.subr.mxu0 0.0
    %861 = vmatpush1.msra.mxu0 0.0
    %862 = vmatprep.subr.mxu0 0.0
    %863 = vmatpush1.msra.mxu0 0.0
    %864 = vmatprep.subr.mxu0 0.0
    %865 = vmatpush1.msra.mxu0 0.0
    %866 = vmatprep.subr.mxu0 0.0
    %867 = vmatpush1.msra.mxu0 0.0
    %868 = vmatprep.subr.mxu0 0.0
    %869 = vmatpush1.msra.mxu0 0.0
    %870 = vmatprep.mubr.f32.mxu0 0.0
    %871 = vmatmul.mubr.f32.gmra.mrb[0].mxu0 %v726
    %v872 = vpop.f32.mrb[0].mxu0
    %v873 = vadd.f32 0.0, %v872
    %v874 = vpop.f32.mrb[0].mxu0
    %875 = vmatprep.mubr.f32.mxu0 0.0
    %876 = vmatmul.mubr.f32.gmra.mrb[0].mxu0 %v729
    %v877 = vpop.f32.mrb[0].mxu0
    %v878 = vadd.f32 0.0, %v877
    %v879 = vpop.f32.mrb[0].mxu0
    %880 = vdwg.mxu0
    %881 = vmatprep.subr.mxu0 0.0
    %882 = vmatpush1.msra.mxu0 %v312
    %883 = vmatprep.subr.mxu0 0.0
    %884 = vmatpush1.msra.mxu0 %v317
    %885 = vmatprep.subr.mxu0 0.0
    %886 = vmatpush1.msra.mxu0 0.0
    %887 = vmatprep.subr.mxu0 0.0
    %888 = vmatpush1.msra.mxu0 0.0
    %889 = vmatprep.subr.mxu0 0.0
    %890 = vmatpush1.msra.mxu0 0.0
    %891 = vmatprep.subr.mxu0 0.0
    %892 = vmatpush1.msra.mxu0 0.0
    %893 = vmatprep.subr.mxu0 0.0
    %894 = vmatpush1.msra.mxu0 0.0
    %895 = vmatprep.subr.mxu0 0.0
    %896 = vmatpush1.msra.mxu0 0.0
    %897 = vmatprep.subr.mxu0 0.0
    %898 = vmatpush1.msra.mxu0 0.0
    %899 = vmatprep.subr.mxu0 0.0
    %900 = vmatpush1.msra.mxu0 0.0
    %901 = vmatprep.subr.mxu0 0.0
    %902 = vmatpush1.msra.mxu0 0.0
    %903 = vmatprep.subr.mxu0 0.0
    %904 = vmatpush1.msra.mxu0 0.0
    %905 = vmatprep.subr.mxu0 0.0
    %906 = vmatpush1.msra.mxu0 0.0
    %907 = vmatprep.subr.mxu0 0.0
    %908 = vmatpush1.msra.mxu0 0.0
    %909 = vmatprep.subr.mxu0 0.0
    %910 = vmatpush1.msra.mxu0 0.0
    %911 = vmatprep.subr.mxu0 0.0
    %912 = vmatpush1.msra.mxu0 0.0
    %913 = vmatprep.subr.mxu0 0.0
    %914 = vmatpush1.msra.mxu0 0.0
    %915 = vmatprep.subr.mxu0 0.0
    %916 = vmatpush1.msra.mxu0 0.0
    %917 = vmatprep.subr.mxu0 0.0
    %918 = vmatpush1.msra.mxu0 0.0
    %919 = vmatprep.subr.mxu0 0.0
    %920 = vmatpush1.msra.mxu0 0.0
    %921 = vmatprep.subr.mxu0 0.0
    %922 = vmatpush1.msra.mxu0 0.0
    %923 = vmatprep.subr.mxu0 0.0
    %924 = vmatpush1.msra.mxu0 0.0
    %925 = vmatprep.subr.mxu0 0.0
    %926 = vmatpush1.msra.mxu0 0.0
    %927 = vmatprep.subr.mxu0 0.0
    %928 = vmatpush1.msra.mxu0 0.0
    %929 = vmatprep.subr.mxu0 0.0
    %930 = vmatpush1.msra.mxu0 0.0
    %931 = vmatprep.subr.mxu0 0.0
    %932 = vmatpush1.msra.mxu0 0.0
    %933 = vmatprep.subr.mxu0 0.0
    %934 = vmatpush1.msra.mxu0 0.0
    %935 = vmatprep.subr.mxu0 0.0
    %936 = vmatpush1.msra.mxu0 0.0
    %937 = vmatprep.subr.mxu0 0.0
    %938 = vmatpush1.msra.mxu0 0.0
    %939 = vmatprep.subr.mxu0 0.0
    %940 = vmatpush1.msra.mxu0 0.0
    %941 = vmatprep.subr.mxu0 0.0
    %942 = vmatpush1.msra.mxu0 0.0
    %943 = vmatprep.subr.mxu0 0.0
    %944 = vmatpush1.msra.mxu0 0.0
    %945 = vmatprep.mubr.f32.mxu0 0.0
    %946 = vmatmul.mubr.f32.gmra.mrb[0].mxu0 %v726
    %v947 = vpop.f32.mrb[0].mxu0
    %v948 = vadd.f32 0.0, %v947
    %v949 = vpop.f32.mrb[0].mxu0
    %950 = vmatprep.mubr.f32.mxu0 0.0
    %951 = vmatmul.mubr.f32.gmra.mrb[0].mxu0 %v729
    %v952 = vpop.f32.mrb[0].mxu0
    %v953 = vadd.f32 0.0, %v952
    %v954 = vpop.f32.mrb[0].mxu0
    %955 = vdwg.mxu0
    %956 = vmatprep.subr.mxu0 0.0
    %957 = vmatpush1.msra.mxu0 %v393
    %958 = vmatprep.subr.mxu0 0.0
    %959 = vmatpush1.msra.mxu0 %v398
    %960 = vmatprep.subr.mxu0 0.0
    %961 = vmatpush1.msra.mxu0 0.0
    %962 = vmatprep.subr.mxu0 0.0
    %963 = vmatpush1.msra.mxu0 0.0
    %964 = vmatprep.subr.mxu0 0.0
    %965 = vmatpush1.msra.mxu0 0.0
    %966 = vmatprep.subr.mxu0 0.0
    %967 = vmatpush1.msra.mxu0 0.0
    %968 = vmatprep.subr.mxu0 0.0
    %969 = vmatpush1.msra.mxu0 0.0
    %970 = vmatprep.subr.mxu0 0.0
    %971 = vmatpush1.msra.mxu0 0.0
    %972 = vmatprep.subr.mxu0 0.0
    %973 = vmatpush1.msra.mxu0 0.0
    %974 = vmatprep.subr.mxu0 0.0
    %975 = vmatpush1.msra.mxu0 0.0
    %976 = vmatprep.subr.mxu0 0.0
    %977 = vmatpush1.msra.mxu0 0.0
    %978 = vmatprep.subr.mxu0 0.0
    %979 = vmatpush1.msra.mxu0 0.0
    %980 = vmatprep.subr.mxu0 0.0
    %981 = vmatpush1.msra.mxu0 0.0
    %982 = vmatprep.subr.mxu0 0.0
    %983 = vmatpush1.msra.mxu0 0.0
    %984 = vmatprep.subr.mxu0 0.0
    %985 = vmatpush1.msra.mxu0 0.0
    %986 = vmatprep.subr.mxu0 0.0
    %987 = vmatpush1.msra.mxu0 0.0
    %988 = vmatprep.subr.mxu0 0.0
    %989 = vmatpush1.msra.mxu0 0.0
    %990 = vmatprep.subr.mxu0 0.0
    %991 = vmatpush1.msra.mxu0 0.0
    %992 = vmatprep.subr.mxu0 0.0
    %993 = vmatpush1.msra.mxu0 0.0
    %994 = vmatprep.subr.mxu0 0.0
    %995 = vmatpush1.msra.mxu0 0.0
    %996 = vmatprep.subr.mxu0 0.0
    %997 = vmatpush1.msra.mxu0 0.0
    %998 = vmatprep.subr.mxu0 0.0
    %999 = vmatpush1.msra.mxu0 0.0
    %1000 = vmatprep.subr.mxu0 0.0
    %1001 = vmatpush1.msra.mxu0 0.0
    %1002 = vmatprep.subr.mxu0 0.0
    %1003 = vmatpush1.msra.mxu0 0.0
    %1004 = vmatprep.subr.mxu0 0.0
    %1005 = vmatpush1.msra.mxu0 0.0
    %1006 = vmatprep.subr.mxu0 0.0
    %1007 = vmatpush1.msra.mxu0 0.0
    %1008 = vmatprep.subr.mxu0 0.0
    %1009 = vmatpush1.msra.mxu0 0.0
    %1010 = vmatprep.subr.mxu0 0.0
    %1011 = vmatpush1.msra.mxu0 0.0
    %1012 = vmatprep.subr.mxu0 0.0
    %1013 = vmatpush1.msra.mxu0 0.0
    %1014 = vmatprep.subr.mxu0 0.0
    %1015 = vmatpush1.msra.mxu0 0.0
    %1016 = vmatprep.subr.mxu0 0.0
    %1017 = vmatpush1.msra.mxu0 0.0
    %1018 = vmatprep.subr.mxu0 0.0
    %1019 = vmatpush1.msra.mxu0 0.0
    %1020 = vmatprep.mubr.f32.mxu0 0.0
    %1021 = vmatmul.mubr.f32.gmra.mrb[0].mxu0 %v726
    %v1022 = vpop.f32.mrb[0].mxu0
    %v1023 = vadd.f32 0.0, %v1022
    %v1024 = vpop.f32.mrb[0].mxu0
    %1025 = vmatprep.mubr.f32.mxu0 0.0
    %1026 = vmatmul.mubr.f32.gmra.mrb[0].mxu0 %v729
    %v1027 = vpop.f32.mrb[0].mxu0
    %v1028 = vadd.f32 0.0, %v1027
    %v1029 = vpop.f32.mrb[0].mxu0
    %1030 = vdwg.mxu0
    %1031 = vmatprep.subr.mxu0 0.0
    %1032 = vmatpush1.msra.mxu0 %v474
    %1033 = vmatprep.subr.mxu0 0.0
    %1034 = vmatpush1.msra.mxu0 %v479
    %1035 = vmatprep.subr.mxu0 0.0
    %1036 = vmatpush1.msra.mxu0 0.0
    %1037 = vmatprep.subr.mxu0 0.0
    %1038 = vmatpush1.msra.mxu0 0.0
    %1039 = vmatprep.subr.mxu0 0.0
    %1040 = vmatpush1.msra.mxu0 0.0
    %1041 = vmatprep.subr.mxu0 0.0
    %1042 = vmatpush1.msra.mxu0 0.0
    %1043 = vmatprep.subr.mxu0 0.0
    %1044 = vmatpush1.msra.mxu0 0.0
    %1045 = vmatprep.subr.mxu0 0.0
    %1046 = vmatpush1.msra.mxu0 0.0
    %1047 = vmatprep.subr.mxu0 0.0
    %1048 = vmatpush1.msra.mxu0 0.0
    %1049 = vmatprep.subr.mxu0 0.0
    %1050 = vmatpush1.msra.mxu0 0.0
    %1051 = vmatprep.subr.mxu0 0.0
    %1052 = vmatpush1.msra.mxu0 0.0
    %1053 = vmatprep.subr.mxu0 0.0
    %1054 = vmatpush1.msra.mxu0 0.0
    %1055 = vmatprep.subr.mxu0 0.0
    %1056 = vmatpush1.msra.mxu0 0.0
    %1057 = vmatprep.subr.mxu0 0.0
    %1058 = vmatpush1.msra.mxu0 0.0
    %1059 = vmatprep.subr.mxu0 0.0
    %1060 = vmatpush1.msra.mxu0 0.0
    %1061 = vmatprep.subr.mxu0 0.0
    %1062 = vmatpush1.msra.mxu0 0.0
    %1063 = vmatprep.subr.mxu0 0.0
    %1064 = vmatpush1.msra.mxu0 0.0
    %1065 = vmatprep.subr.mxu0 0.0
    %1066 = vmatpush1.msra.mxu0 0.0
    %1067 = vmatprep.subr.mxu0 0.0
    %1068 = vmatpush1.msra.mxu0 0.0
    %1069 = vmatprep.subr.mxu0 0.0
    %1070 = vmatpush1.msra.mxu0 0.0
    %1071 = vmatprep.subr.mxu0 0.0
    %1072 = vmatpush1.msra.mxu0 0.0
    %1073 = vmatprep.subr.mxu0 0.0
    %1074 = vmatpush1.msra.mxu0 0.0
    %1075 = vmatprep.subr.mxu0 0.0
    %1076 = vmatpush1.msra.mxu0 0.0
    %1077 = vmatprep.subr.mxu0 0.0
    %1078 = vmatpush1.msra.mxu0 0.0
    %1079 = vmatprep.subr.mxu0 0.0
    %1080 = vmatpush1.msra.mxu0 0.0
    %1081 = vmatprep.subr.mxu0 0.0
    %1082 = vmatpush1.msra.mxu0 0.0
    %1083 = vmatprep.subr.mxu0 0.0
    %1084 = vmatpush1.msra.mxu0 0.0
    %1085 = vmatprep.subr.mxu0 0.0
    %1086 = vmatpush1.msra.mxu0 0.0
    %1087 = vmatprep.subr.mxu0 0.0
    %1088 = vmatpush1.msra.mxu0 0.0
    %1089 = vmatprep.subr.mxu0 0.0
    %1090 = vmatpush1.msra.mxu0 0.0
    %1091 = vmatprep.subr.mxu0 0.0
    %1092 = vmatpush1.msra.mxu0 0.0
    %1093 = vmatprep.subr.mxu0 0.0
    %1094 = vmatpush1.msra.mxu0 0.0
    %1095 = vmatprep.mubr.f32.mxu0 0.0
    %1096 = vmatmul.mubr.f32.gmra.mrb[0].mxu0 %v726
    %v1097 = vpop.f32.mrb[0].mxu0
    %v1098 = vadd.f32 0.0, %v1097
    %v1099 = vpop.f32.mrb[0].mxu0
    %1100 = vmatprep.mubr.f32.mxu0 0.0
    %1101 = vmatmul.mubr.f32.gmra.mrb[0].mxu0 %v729
    %v1102 = vpop.f32.mrb[0].mxu0
    %v1103 = vadd.f32 0.0, %v1102
    %v1104 = vpop.f32.mrb[0].mxu0
    %1105 = vdwg.mxu0
    %1106 = vmatprep.subr.mxu0 0.0
    %1107 = vmatpush1.msra.mxu0 %v555
    %1108 = vmatprep.subr.mxu0 0.0
    %1109 = vmatpush1.msra.mxu0 %v560
    %1110 = vmatprep.subr.mxu0 0.0
    %1111 = vmatpush1.msra.mxu0 0.0
    %1112 = vmatprep.subr.mxu0 0.0
    %1113 = vmatpush1.msra.mxu0 0.0
    %1114 = vmatprep.subr.mxu0 0.0
    %1115 = vmatpush1.msra.mxu0 0.0
    %1116 = vmatprep.subr.mxu0 0.0
    %1117 = vmatpush1.msra.mxu0 0.0
    %1118 = vmatprep.subr.mxu0 0.0
    %1119 = vmatpush1.msra.mxu0 0.0
    %1120 = vmatprep.subr.mxu0 0.0
    %1121 = vmatpush1.msra.mxu0 0.0
    %1122 = vmatprep.subr.mxu0 0.0
    %1123 = vmatpush1.msra.mxu0 0.0
    %1124 = vmatprep.subr.mxu0 0.0
    %1125 = vmatpush1.msra.mxu0 0.0
    %1126 = vmatprep.subr.mxu0 0.0
    %1127 = vmatpush1.msra.mxu0 0.0
    %1128 = vmatprep.subr.mxu0 0.0
    %1129 = vmatpush1.msra.mxu0 0.0
    %1130 = vmatprep.subr.mxu0 0.0
    %1131 = vmatpush1.msra.mxu0 0.0
    %1132 = vmatprep.subr.mxu0 0.0
    %1133 = vmatpush1.msra.mxu0 0.0
    %1134 = vmatprep.subr.mxu0 0.0
    %1135 = vmatpush1.msra.mxu0 0.0
    %1136 = vmatprep.subr.mxu0 0.0
    %1137 = vmatpush1.msra.mxu0 0.0
    %1138 = vmatprep.subr.mxu0 0.0
    %1139 = vmatpush1.msra.mxu0 0.0
    %1140 = vmatprep.subr.mxu0 0.0
    %1141 = vmatpush1.msra.mxu0 0.0
    %1142 = vmatprep.subr.mxu0 0.0
    %1143 = vmatpush1.msra.mxu0 0.0
    %1144 = vmatprep.subr.mxu0 0.0
    %1145 = vmatpush1.msra.mxu0 0.0
    %1146 = vmatprep.subr.mxu0 0.0
    %1147 = vmatpush1.msra.mxu0 0.0
    %1148 = vmatprep.subr.mxu0 0.0
    %1149 = vmatpush1.msra.mxu0 0.0
    %1150 = vmatprep.subr.mxu0 0.0
    %1151 = vmatpush1.msra.mxu0 0.0
    %1152 = vmatprep.subr.mxu0 0.0
    %1153 = vmatpush1.msra.mxu0 0.0
    %1154 = vmatprep.subr.mxu0 0.0
    %1155 = vmatpush1.msra.mxu0 0.0
    %1156 = vmatprep.subr.mxu0 0.0
    %1157 = vmatpush1.msra.mxu0 0.0
    %1158 = vmatprep.subr.mxu0 0.0
    %1159 = vmatpush1.msra.mxu0 0.0
    %1160 = vmatprep.subr.mxu0 0.0
    %1161 = vmatpush1.msra.mxu0 0.0
    %1162 = vmatprep.subr.mxu0 0.0
    %1163 = vmatpush1.msra.mxu0 0.0
    %1164 = vmatprep.subr.mxu0 0.0
    %1165 = vmatpush1.msra.mxu0 0.0
    %1166 = vmatprep.subr.mxu0 0.0
    %1167 = vmatpush1.msra.mxu0 0.0
    %1168 = vmatprep.subr.mxu0 0.0
    %1169 = vmatpush1.msra.mxu0 0.0
    %1170 = vmatprep.mubr.f32.mxu0 0.0
    %1171 = vmatmul.mubr.f32.gmra.mrb[0].mxu0 %v726
    %v1172 = vpop.f32.mrb[0].mxu0
    %v1173 = vadd.f32 0.0, %v1172
    %v1174 = vpop.f32.mrb[0].mxu0
    %1175 = vmatprep.mubr.f32.mxu0 0.0
    %1176 = vmatmul.mubr.f32.gmra.mrb[0].mxu0 %v729
    %v1177 = vpop.f32.mrb[0].mxu0
    %v1178 = vadd.f32 0.0, %v1177
    %v1179 = vpop.f32.mrb[0].mxu0
    %1180 = vdwg.mxu0
    %1181 = vmatprep.subr.mxu0 0.0
    %1182 = vmatpush1.msra.mxu0 %v636
    %1183 = vmatprep.subr.mxu0 0.0
    %1184 = vmatpush1.msra.mxu0 %v641
    %1185 = vmatprep.subr.mxu0 0.0
    %1186 = vmatpush1.msra.mxu0 0.0
    %1187 = vmatprep.subr.mxu0 0.0
    %1188 = vmatpush1.msra.mxu0 0.0
    %1189 = vmatprep.subr.mxu0 0.0
    %1190 = vmatpush1.msra.mxu0 0.0
    %1191 = vmatprep.subr.mxu0 0.0
    %1192 = vmatpush1.msra.mxu0 0.0
    %1193 = vmatprep.subr.mxu0 0.0
    %1194 = vmatpush1.msra.mxu0 0.0
    %1195 = vmatprep.subr.mxu0 0.0
    %1196 = vmatpush1.msra.mxu0 0.0
    %1197 = vmatprep.subr.mxu0 0.0
    %1198 = vmatpush1.msra.mxu0 0.0
    %1199 = vmatprep.subr.mxu0 0.0
    %1200 = vmatpush1.msra.mxu0 0.0
    %1201 = vmatprep.subr.mxu0 0.0
    %1202 = vmatpush1.msra.mxu0 0.0
    %1203 = vmatprep.subr.mxu0 0.0
    %1204 = vmatpush1.msra.mxu0 0.0
    %1205 = vmatprep.subr.mxu0 0.0
    %1206 = vmatpush1.msra.mxu0 0.0
    %1207 = vmatprep.subr.mxu0 0.0
    %1208 = vmatpush1.msra.mxu0 0.0
    %1209 = vmatprep.subr.mxu0 0.0
    %1210 = vmatpush1.msra.mxu0 0.0
    %1211 = vmatprep.subr.mxu0 0.0
    %1212 = vmatpush1.msra.mxu0 0.0
    %1213 = vmatprep.subr.mxu0 0.0
    %1214 = vmatpush1.msra.mxu0 0.0
    %1215 = vmatprep.subr.mxu0 0.0
    %1216 = vmatpush1.msra.mxu0 0.0
    %1217 = vmatprep.subr.mxu0 0.0
    %1218 = vmatpush1.msra.mxu0 0.0
    %1219 = vmatprep.subr.mxu0 0.0
    %1220 = vmatpush1.msra.mxu0 0.0
    %1221 = vmatprep.subr.mxu0 0.0
    %1222 = vmatpush1.msra.mxu0 0.0
    %1223 = vmatprep.subr.mxu0 0.0
    %1224 = vmatpush1.msra.mxu0 0.0
    %1225 = vmatprep.subr.mxu0 0.0
    %1226 = vmatpush1.msra.mxu0 0.0
    %1227 = vmatprep.subr.mxu0 0.0
    %1228 = vmatpush1.msra.mxu0 0.0
    %1229 = vmatprep.subr.mxu0 0.0
    %1230 = vmatpush1.msra.mxu0 0.0
    %1231 = vmatprep.subr.mxu0 0.0
    %1232 = vmatpush1.msra.mxu0 0.0
    %1233 = vmatprep.subr.mxu0 0.0
    %1234 = vmatpush1.msra.mxu0 0.0
    %1235 = vmatprep.subr.mxu0 0.0
    %1236 = vmatpush1.msra.mxu0 0.0
    %1237 = vmatprep.subr.mxu0 0.0
    %1238 = vmatpush1.msra.mxu0 0.0
    %1239 = vmatprep.subr.mxu0 0.0
    %1240 = vmatpush1.msra.mxu0 0.0
    %1241 = vmatprep.subr.mxu0 0.0
    %1242 = vmatpush1.msra.mxu0 0.0
    %1243 = vmatprep.subr.mxu0 0.0
    %1244 = vmatpush1.msra.mxu0 0.0
    %1245 = vmatprep.mubr.f32.mxu0 0.0
    %1246 = vmatmul.mubr.f32.gmra.mrb[0].mxu0 %v726
    %v1247 = vpop.f32.mrb[0].mxu0
    %v1248 = vadd.f32 0.0, %v1247
    %v1249 = vpop.f32.mrb[0].mxu0
    %1250 = vmatprep.mubr.f32.mxu0 0.0
    %1251 = vmatmul.mubr.f32.gmra.mrb[0].mxu0 %v729
    %v1252 = vpop.f32.mrb[0].mxu0
    %v1253 = vadd.f32 0.0, %v1252
    %v1254 = vpop.f32.mrb[0].mxu0
    %1255 = vdwg.mxu0
    %1256 = vmatprep.subr.mxu0 0.0
    %1257 = vmatpush1.msra.mxu0 %v717
    %1258 = vmatprep.subr.mxu0 0.0
    %1259 = vmatpush1.msra.mxu0 %v722
    %1260 = vmatprep.subr.mxu0 0.0
    %1261 = vmatpush1.msra.mxu0 0.0
    %1262 = vmatprep.subr.mxu0 0.0
    %1263 = vmatpush1.msra.mxu0 0.0
    %1264 = vmatprep.subr.mxu0 0.0
    %1265 = vmatpush1.msra.mxu0 0.0
    %1266 = vmatprep.subr.mxu0 0.0
    %1267 = vmatpush1.msra.mxu0 0.0
    %1268 = vmatprep.subr.mxu0 0.0
    %1269 = vmatpush1.msra.mxu0 0.0
    %1270 = vmatprep.subr.mxu0 0.0
    %1271 = vmatpush1.msra.mxu0 0.0
    %1272 = vmatprep.subr.mxu0 0.0
    %1273 = vmatpush1.msra.mxu0 0.0
    %1274 = vmatprep.subr.mxu0 0.0
    %1275 = vmatpush1.msra.mxu0 0.0
    %1276 = vmatprep.subr.mxu0 0.0
    %1277 = vmatpush1.msra.mxu0 0.0
    %1278 = vmatprep.subr.mxu0 0.0
    %1279 = vmatpush1.msra.mxu0 0.0
    %1280 = vmatprep.subr.mxu0 0.0
    %1281 = vmatpush1.msra.mxu0 0.0
    %1282 = vmatprep.subr.mxu0 0.0
    %1283 = vmatpush1.msra.mxu0 0.0
    %1284 = vmatprep.subr.mxu0 0.0
    %1285 = vmatpush1.msra.mxu0 0.0
    %1286 = vmatprep.subr.mxu0 0.0
    %1287 = vmatpush1.msra.mxu0 0.0
    %1288 = vmatprep.subr.mxu0 0.0
    %1289 = vmatpush1.msra.mxu0 0.0
    %1290 = vmatprep.subr.mxu0 0.0
    %1291 = vmatpush1.msra.mxu0 0.0
    %1292 = vmatprep.subr.mxu0 0.0
    %1293 = vmatpush1.msra.mxu0 0.0
    %1294 = vmatprep.subr.mxu0 0.0
    %1295 = vmatpush1.msra.mxu0 0.0
    %1296 = vmatprep.subr.mxu0 0.0
    %1297 = vmatpush1.msra.mxu0 0.0
    %1298 = vmatprep.subr.mxu0 0.0
    %1299 = vmatpush1.msra.mxu0 0.0
    %1300 = vmatprep.subr.mxu0 0.0
    %1301 = vmatpush1.msra.mxu0 0.0
    %1302 = vmatprep.subr.mxu0 0.0
    %1303 = vmatpush1.msra.mxu0 0.0
    %1304 = vmatprep.subr.mxu0 0.0
    %1305 = vmatpush1.msra.mxu0 0.0
    %1306 = vmatprep.subr.mxu0 0.0
    %1307 = vmatpush1.msra.mxu0 0.0
    %1308 = vmatprep.subr.mxu0 0.0
    %1309 = vmatpush1.msra.mxu0 0.0
    %1310 = vmatprep.subr.mxu0 0.0
    %1311 = vmatpush1.msra.mxu0 0.0
    %1312 = vmatprep.subr.mxu0 0.0
    %1313 = vmatpush1.msra.mxu0 0.0
    %1314 = vmatprep.subr.mxu0 0.0
    %1315 = vmatpush1.msra.mxu0 0.0
    %1316 = vmatprep.subr.mxu0 0.0
    %1317 = vmatpush1.msra.mxu0 0.0
    %1318 = vmatprep.subr.mxu0 0.0
    %1319 = vmatpush1.msra.mxu0 0.0
    %1320 = vmatprep.mubr.f32.mxu0 0.0
    %1321 = vmatmul.mubr.f32.gmra.mrb[0].mxu0 %v726
    %v1322 = vpop.f32.mrb[0].mxu0
    %v1323 = vadd.f32 0.0, %v1322
    %v1324 = vpop.f32.mrb[0].mxu0
    %1325 = vmatprep.mubr.f32.mxu0 0.0
    %1326 = vmatmul.mubr.f32.gmra.mrb[0].mxu0 %v729
    %v1327 = vpop.f32.mrb[0].mxu0
    %v1328 = vadd.f32 0.0, %v1327
    %v1329 = vpop.f32.mrb[0].mxu0
    %1330 = vdwg.mxu0
    %1331 = vst.msk [vmem:[#allocation8] sm:$0xff] %vm76, %v798
    %1332 = vst.msk [vmem:[#allocation8 + $0x8] sm:$0xff] %vm76, %v803
    %1333 = vst.msk [vmem:[#allocation8 + $0x10] sm:$0xff] %vm76, %v873
    %1334 = vst.msk [vmem:[#allocation8 + $0x18] sm:$0xff] %vm76, %v878
    %1335 = vst.msk [vmem:[#allocation8 + $0x20] sm:$0xff] %vm76, %v948
    %1336 = vst.msk [vmem:[#allocation8 + $0x28] sm:$0xff] %vm76, %v953
    %1337 = vst.msk [vmem:[#allocation8 + $0x30] sm:$0xff] %vm76, %v1023
    %1338 = vst.msk [vmem:[#allocation8 + $0x38] sm:$0xff] %vm76, %v1028
    %1339 = vst.msk [vmem:[#allocation8 + $0x40] sm:$0xff] %vm76, %v1098
    %1340 = vst.msk [vmem:[#allocation8 + $0x48] sm:$0xff] %vm76, %v1103
    %1341 = vst.msk [vmem:[#allocation8 + $0x50] sm:$0xff] %vm76, %v1173
    %1342 = vst.msk [vmem:[#allocation8 + $0x58] sm:$0xff] %vm76, %v1178
    %1343 = vst.msk [vmem:[#allocation8 + $0x60] sm:$0xff] %vm76, %v1248
    %1344 = vst.msk [vmem:[#allocation8 + $0x68] sm:$0xff] %vm76, %v1253
    %1345 = vst.msk [vmem:[#allocation8 + $0x70] sm:$0xff] %vm76, %v1323
    %1346 = vst.msk [vmem:[#allocation8 + $0x78] sm:$0xff] %vm76, %v1328
    // Predicated region
    $region26: #{tpu_custom_call.1} parent=1 // pred_check
      _
    $region27: #{tpu_custom_call.1} parent=1 // pred_check_branch
      %1348 = sbr.rel (0) target = $region29
    $region28: #{tpu_custom_call.1} parent=1 // pred_region
      %s1350 = ssub.s32 2048, 2048
      %1351 = vsyncadd [#allocation4], %s1350
      %s1352 = sshll.u32 [#allocation8], 4
      %s1353 = int_to_ptr.vmem [resolvable:$true] %s1352
      %1358 = dma.vmem_to_hbm [thread:$0]  %s1353, 2048, %s3, [#allocation4], 128, 128, 8
    $region29: #{tpu_custom_call.1} parent=1 // pred_fallthru
      _
    // Predicated region
    $region30: #{tpu_custom_call.1} parent=1 // pred_check
      _
    $region31: #{tpu_custom_call.1} parent=1 // pred_check_branch
      %1360 = sbr.rel (0) target = $region33
    $region32: #{tpu_custom_call.1} parent=1 // pred_region
      %1361 = dma.done [#allocation4], 2048
    $region33: #{tpu_custom_call.1} parent=1 // pred_fallthru
      _
    %1362 = vsyncpa [#allocation3], 1
    %1363 = vsyncpa [#allocation6], 1
    %1364 = vsyncpa [#allocation4], 1

</llo_original>
